<compile_context>
chip_gen: v5e
topology: v5e:2x2
jax: 0.10.0
libtpu: 0.0.40
codegen_flags: <defaults>
</compile_context>

<pallas_src>
import functools

import jax
import jax.numpy as jnp
from jax.experimental import pallas as pl
from jax.experimental.pallas import tpu as pltpu


def _round_up(n, m):
    return ((n + m - 1) // m) * m


def _layernorm_kernel(x_ref, a_ref, b_ref, o_ref, *, eps):
    # x_ref: [TM, D]; a_ref/b_ref: [1, D]; o_ref: [TM, D]
    x = x_ref[...].astype(jnp.float32)
    d = x.shape[-1]
    mean = jnp.mean(x, axis=-1, keepdims=True)
    xc = x - mean
    # PyTorch torch.std defaults to the unbiased estimator (ddof=1).
    var = jnp.sum(xc * xc, axis=-1, keepdims=True) * jnp.float32(1.0 / (d - 1))
    std = jnp.sqrt(var)
    # eps is added to std (not variance) to match the PyTorch reference exactly.
    inv = 1.0 / (std + jnp.float32(eps))
    scale = a_ref[...].astype(jnp.float32) * inv              # (TM, D)
    o_ref[...] = (xc * scale + b_ref[...].astype(jnp.float32)).astype(o_ref.dtype)


@functools.partial(jax.jit, static_argnames=("eps", "row_tile"))
def encoder_layernorm(x, a, b, *, eps=1e-6, row_tile=2048):
    """Custom LayerNorm over the last axis of x: [..., D] -> [..., D]."""
    orig_shape = x.shape
    D = orig_shape[-1]
    N = x.size // D
    x2d = x.reshape(N, D)

    # Large row tiles amortize the ~0.35us/grid-step overhead and keep the DMA
    # engines fed; clamp for small inputs. The row tile is a multiple of 8
    # (sublane constraint); the last (ragged) grid block is read-padded and
    # write-masked by Pallas — safe because stats are per-row over the full
    # lane axis.
    tile = min(row_tile, _round_up(N, 8))
    grid = pl.cdiv(N, tile)

    a2d = a.reshape(1, D)
    b2d = b.reshape(1, D)

    out2d = pl.pallas_call(
        functools.partial(_layernorm_kernel, eps=eps),
        out_shape=jax.ShapeDtypeStruct((N, D), x.dtype),
        grid_spec=pltpu.PrefetchScalarGridSpec(
            num_scalar_prefetch=0,
            grid=(grid,),
            in_specs=[
                pl.BlockSpec((tile, D), lambda i: (i, 0)),   # x row tile
                pl.BlockSpec((1, D), lambda i: (0, 0)),      # scale a
                pl.BlockSpec((1, D), lambda i: (0, 0)),      # shift b
            ],
            out_specs=pl.BlockSpec((tile, D), lambda i: (i, 0)),
        ),
        compiler_params=pltpu.CompilerParams(
            dimension_semantics=("parallel",),
        ),
    )(x2d, a2d, b2d)

    return out2d.reshape(orig_shape)


def encoder_forward(x, mask, a, b, *, eps=1e-6, row_tile=2048):
    """Encoder.forward: per-layer stack (unspecified in the reference) + LayerNorm."""
    # TODO(synk): the per-layer stack `for layer in self.layers: x = layer(x, mask)`
    # is not translatable — `layer` is an undefined constructor argument in the
    # reference spec; only the Encoder's final LayerNorm is implemented here.
    # (Structurally, this norm should be fused into the last layer's epilogue
    # once that layer is defined — a standalone norm is bounded by one HBM
    # read + write of x.)
    del mask
    return encoder_layernorm(x, a, b, eps=eps, row_tile=row_tile)


def _reference_layernorm(x, a, b, eps=1e-6):
    x = x.astype(jnp.float32)
    mean = x.mean(-1, keepdims=True)
    xc = x - mean
    std = jnp.sqrt(jnp.sum(xc * xc, -1, keepdims=True) / (x.shape[-1] - 1))
    return a * xc / (std + eps) + b


if __name__ == "__main__":
    # Small shapes consistent with the module's forward: x is [batch, seq, d_model].
    # d_model=128 keeps the feature (lane) axis dense.
    B, S, D = 2, 8, 128
    eps = 1e-6

    key = jax.random.PRNGKey(0)
    kx, ka, kb, km = jax.random.split(key, 4)

    x = jax.random.normal(kx, (B, S, D), dtype=jnp.float32)
    mask = (jax.random.uniform(km, (B, S, S)) > 0.5).astype(jnp.float32)  # unused
    # LayerNorm params (module init is ones/zeros; perturb so the affine part
    # is actually exercised).
    a = jnp.ones((D,), jnp.float32) + 0.1 * jax.random.normal(ka, (D,), jnp.float32)
    b = 0.1 * jax.random.normal(kb, (D,), jnp.float32)

    out = encoder_forward(x, mask, a, b, eps=eps)
    out = jax.block_until_ready(out)

    ref = _reference_layernorm(x, a, b, eps=eps)
    assert out.shape == (B, S, D)
    assert jnp.allclose(out, ref, atol=1e-5, rtol=1e-5), "mismatch vs reference"

    # Ragged-N exercise: row count not a multiple of the tile / 8.
    x_rag = jax.random.normal(kx, (3, 7, D), dtype=jnp.float32)
    out_rag = jax.block_until_ready(encoder_layernorm(x_rag, a, b, eps=eps))
    ref_rag = _reference_layernorm(x_rag, a, b, eps=eps)
    assert jnp.allclose(out_rag, ref_rag, atol=1e-5, rtol=1e-5), "ragged mismatch"

    print("KERNEL_OK")
</pallas_src>

<mosaic_0001>
module attributes {stable_mosaic.version = 11 : i64} {
  func.func @_layernorm_kernel(%arg0: i32, %arg1: memref<16x128xf32, #tpu.memory_space<vmem>>, %arg2: memref<1x128xf32, #tpu.memory_space<vmem>>, %arg3: memref<1x128xf32, #tpu.memory_space<vmem>>, %arg4: memref<16x128xf32, #tpu.memory_space<vmem>>) attributes {dimension_semantics = [#tpu.dimension_semantics<parallel>], iteration_bounds = array<i64: 1>, scalar_prefetch = 0 : i64, scratch_operands = 0 : i64, tpu.core_type = #tpu.core_type<tc>, window_params = [{transform_indices = @transform_0, window_bounds = array<i64: 16, 128>}, {pipeline_mode = #tpu.pipeline_mode<synchronous>, transform_indices = @transform_1, window_bounds = array<i64: 1, 128>}, {pipeline_mode = #tpu.pipeline_mode<synchronous>, transform_indices = @transform_2, window_bounds = array<i64: 1, 128>}, {transform_indices = @transform_3, window_bounds = array<i64: 16, 128>}]} {
    %c0 = arith.constant 0 : index
    %c0_0 = arith.constant 0 : index
    %0 = vector.load %arg1[%c0, %c0_0] : memref<16x128xf32, #tpu.memory_space<vmem>>, vector<16x128xf32>
    %cst = arith.constant dense<0.000000e+00> : vector<16xf32>
    %1 = vector.multi_reduction <add>, %0, %cst [1] : vector<16x128xf32> to vector<16xf32>
    %2 = vector.shape_cast %1 : vector<16xf32> to vector<16x1xf32>
    %cst_1 = arith.constant 1.280000e+02 : f32
    %3 = vector.broadcast %cst_1 : f32 to vector<16x1xf32>
    %4 = arith.divf %2, %3 : vector<16x1xf32>
    %5 = vector.broadcast %4 : vector<16x1xf32> to vector<16x128xf32>
    %6 = arith.subf %0, %5 : vector<16x128xf32>
    %7 = arith.mulf %6, %6 : vector<16x128xf32>
    %cst_2 = arith.constant dense<0.000000e+00> : vector<16xf32>
    %8 = vector.multi_reduction <add>, %7, %cst_2 [1] : vector<16x128xf32> to vector<16xf32>
    %9 = vector.shape_cast %8 : vector<16xf32> to vector<16x1xf32>
    %cst_3 = arith.constant 0.00787401571 : f32
    %10 = vector.broadcast %cst_3 : f32 to vector<16x1xf32>
    %11 = arith.mulf %9, %10 : vector<16x1xf32>
    %12 = math.sqrt %11 : vector<16x1xf32>
    %cst_4 = arith.constant 9.99999997E-7 : f32
    %13 = vector.broadcast %cst_4 : f32 to vector<16x1xf32>
    %14 = arith.addf %12, %13 : vector<16x1xf32>
    %cst_5 = arith.constant 1.000000e+00 : f32
    %15 = vector.broadcast %cst_5 : f32 to vector<16x1xf32>
    %16 = arith.divf %15, %14 : vector<16x1xf32>
    %c0_6 = arith.constant 0 : index
    %c0_7 = arith.constant 0 : index
    %17 = vector.load %arg2[%c0_6, %c0_7] : memref<1x128xf32, #tpu.memory_space<vmem>>, vector<1x128xf32>
    %18 = vector.broadcast %17 : vector<1x128xf32> to vector<16x128xf32>
    %19 = vector.broadcast %16 : vector<16x1xf32> to vector<16x128xf32>
    %20 = arith.mulf %18, %19 : vector<16x128xf32>
    %21 = arith.mulf %6, %20 : vector<16x128xf32>
    %c0_8 = arith.constant 0 : index
    %c0_9 = arith.constant 0 : index
    %22 = vector.load %arg3[%c0_8, %c0_9] : memref<1x128xf32, #tpu.memory_space<vmem>>, vector<1x128xf32>
    %23 = vector.broadcast %22 : vector<1x128xf32> to vector<16x128xf32>
    %24 = arith.addf %21, %23 : vector<16x128xf32>
    %c0_10 = arith.constant 0 : index
    %c0_11 = arith.constant 0 : index
    %25 = vector.load %arg4[%c0_10, %c0_11] : memref<16x128xf32, #tpu.memory_space<vmem>>, vector<16x128xf32>
    tpu.vector_store %arg4[%c0_10, %c0_11], %24 {strides = array<i32>} : memref<16x128xf32, #tpu.memory_space<vmem>>, vector<16x128xf32>,
    return
  }
  func.func @transform_0(%arg0: i32) -> (i32, i32) {
    %c0_i32 = arith.constant 0 : i32
    %c0_i32_0 = arith.constant 0 : i32
    return %arg0, %c0_i32 : i32, i32
  }
  func.func @transform_1(%arg0: i32) -> (i32, i32) {
    %c0_i32 = arith.constant 0 : i32
    %c0_i32_0 = arith.constant 0 : i32
    %c0_i32_1 = arith.constant 0 : i32
    return %c0_i32, %c0_i32_0 : i32, i32
  }
  func.func @transform_2(%arg0: i32) -> (i32, i32) {
    %c0_i32 = arith.constant 0 : i32
    %c0_i32_0 = arith.constant 0 : i32
    %c0_i32_1 = arith.constant 0 : i32
    return %c0_i32, %c0_i32_0 : i32, i32
  }
  func.func @transform_3(%arg0: i32) -> (i32, i32) {
    %c0_i32 = arith.constant 0 : i32
    %c0_i32_0 = arith.constant 0 : i32
    return %arg0, %c0_i32 : i32, i32
  }
}

</mosaic_0001>

<llo_original>
// kernel: encoder_layernorm.1
$region0: #{encoder_layernorm.1}
  #allocation0 [shape = 'u32[]', space=smem, size = 0x4, offset = 0x4, fixed_abs, tag = 'smem constant byte address 0x4 - core index']
  #allocation1 [shape = 'u32[72,128]{1,0:T(1,128)}', space=vmem, size = 0x9000, scoped, tag = 'internal scratch']
  %s0 = inlined_call_operand.hbm [shape: f32[16,128], index: 0, kind: input, shape index: {}]
  %s1 = inlined_call_operand.vmem [shape: f32[1,128], index: 1, kind: input, shape index: {}]
  %s2 = inlined_call_operand.vmem [shape: f32[1,128], index: 2, kind: input, shape index: {}]
  %s3 = inlined_call_operand.hbm [shape: f32[16,128], index: 3, kind: output, shape index: {}]
  %s4 = sld [smem:[#allocation0]]
  $region26: #{encoder_layernorm.1} parent=0
    _
  %s6 = ssub.s32 1, %s4
  %s7 = scalar_select 0, %s6, %s4
  $region1: #{encoder_layernorm.1} parent=0
    #allocation2 [shape = 'u8[8192]{0}', space=vmem, size = 0x2000, scoped, tag = 'input window, operand 0, single buffered']
    #allocation3 [shape = 's32[1]{0}', space=sflag, size = 0x4, scoped, tag = 'scoped memory for encoder_layernorm.1']
    #allocation4 [shape = 's32[1]{0}', space=sflag, size = 0x4, scoped, tag = 'scoped memory for encoder_layernorm.1']
    #allocation5 [shape = 'u8[8192]{0}', space=vmem, size = 0x2000, scoped, tag = 'output window, operand 0, single buffered']
    %8 = vsyncpa [#allocation3], 0
    %9 = vsyncpa [#allocation4], 0
    // Predicated region
    $region2: #{encoder_layernorm.1} parent=1 // pred_check
      _
    $region3: #{encoder_layernorm.1} parent=1 // pred_check_branch
      %11 = sbr.rel (0) target = $region5
    $region4: #{encoder_layernorm.1} parent=1 // pred_region
      %13 = vsyncadd [#allocation3], 0
      %s14 = sshll.u32 %s0, 4
      %s15 = int_to_ptr.hbm [resolvable:$true] %s14
      %s16 = sshll.u32 [#allocation2], 4
      %s17 = int_to_ptr.vmem [resolvable:$true] %s16
      %22 = dma.hbm_to_vmem [thread:$0]  %s15, 256, %s17, [#allocation3], 128, 128, 8
    $region5: #{encoder_layernorm.1} parent=1 // pred_fallthru
      _
    // Predicated region
    $region6: #{encoder_layernorm.1} parent=1 // pred_check
      _
    $region7: #{encoder_layernorm.1} parent=1 // pred_check_branch
      %24 = sbr.rel (0) target = $region9
    $region8: #{encoder_layernorm.1} parent=1 // pred_region
      _
    $region9: #{encoder_layernorm.1} parent=1 // pred_fallthru
      _
    // Predicated region
    $region10: #{encoder_layernorm.1} parent=1 // pred_check
      _
    $region11: #{encoder_layernorm.1} parent=1 // pred_check_branch
      %26 = sbr.rel (0) target = $region13
    $region12: #{encoder_layernorm.1} parent=1 // pred_region
      _
    $region13: #{encoder_layernorm.1} parent=1 // pred_fallthru
      _
    // Predicated region
    $region14: #{encoder_layernorm.1} parent=1 // pred_check
      _
    $region15: #{encoder_layernorm.1} parent=1 // pred_check_branch
      %28 = sbr.rel (0) target = $region17
    $region16: #{encoder_layernorm.1} parent=1 // pred_region
      %30 = dma.done [#allocation3], 256
    $region17: #{encoder_layernorm.1} parent=1 // pred_fallthru
      _
    %v31 = vld [vmem:[#allocation2] sm:$0xff]
    %v32 = vld [vmem:[#allocation2 + $0x8] sm:$0xff]
    %33 = vadd.xlane.f32.xlu0 %v31
    %v34 = vpop.xlane.xlu0 %33
    %35 = vadd.xlane.f32.xlu0 %v32
    %v36 = vpop.xlane.xlu0 %35
    %v37 = vrcp.pop 128.0
    %v38 = vmul.f32 128.0, %v37
    %v39 = vsub.f32 1.0, %v38
    %v40 = vmul.f32 %v37, %v39
    %v41 = vadd.f32 %v37, %v40
    %vm42 = vweird.f32 %v37
    %v43 = vsel %vm42, %v37, %v41
    %v44 = vmul.f32 %v34, %v43
    %v45 = vmul.f32 %v36, %v43
    %v46 = vsub.f32 %v31, %v44
    %v47 = vsub.f32 %v32, %v45
    %v48 = vmul.f32 %v46, %v46
    %v49 = vmul.f32 %v47, %v47
    %50 = vadd.xlane.f32.xlu0 %v48
    %v51 = vpop.xlane.xlu0 %50
    %52 = vadd.xlane.f32.xlu0 %v49
    %v53 = vpop.xlane.xlu0 %52
    %v54 = vmul.f32 %v51, 0.007874016
    %v55 = vmul.f32 %v53, 0.007874016
    %v56 = vrsqrt.pop %v54
    %v57 = vmul.f32 %v56, %v54
    %v58 = vmul.f32 %v57, %v56
    %v59 = vmul.f32 0.5, %v58
    %v60 = vsub.f32 1.5, %v59
    %v61 = vmul.f32 %v56, %v60
    %v62 = vmul.f32 %v54, %v61
    %vm63 = vcmp.eq.f32.partialorder %v54, inf
    %v64 = vsel %vm63, %v54, %v62
    %vm65 = vcmp.eq.f32.partialorder %v54, 0.0
    %v66 = vand.u32 %v54, 2147483648
    %v67 = vsel %vm65, %v66, %v64
    %v68 = vrsqrt.pop %v55
    %v69 = vmul.f32 %v68, %v55
    %v70 = vmul.f32 %v69, %v68
    %v71 = vmul.f32 0.5, %v70
    %v72 = vsub.f32 1.5, %v71
    %v73 = vmul.f32 %v68, %v72
    %v74 = vmul.f32 %v55, %v73
    %vm75 = vcmp.eq.f32.partialorder %v55, inf
    %v76 = vsel %vm75, %v55, %v74
    %vm77 = vcmp.eq.f32.partialorder %v55, 0.0
    %v78 = vand.u32 %v55, 2147483648
    %v79 = vsel %vm77, %v78, %v76
    %v80 = vadd.f32 %v67, 1e-06
    %v81 = vadd.f32 %v79, 1e-06
    %v82 = vrcp.pop %v80
    %v83 = vmul.f32 %v80, %v82
    %v84 = vsub.f32 1.0, %v83
    %v85 = vmul.f32 %v82, %v84
    %v86 = vadd.f32 %v82, %v85
    %vm87 = vweird.f32 %v80
    %vm88 = vweird.f32 %v82
    %vm89 = vmor %vm87, %vm88
    %v90 = vsel %vm89, %v82, %v86
    %v91 = vand.u32 2147483647, %v80
    %vm92 = vcmp.eq.f32.partialorder %v91, 8.507059e+37
    %v93 = vand.u32 %v80, 2147483648
    %v94 = vor.u32 1.1754944e-38, %v93
    %v95 = vsel %vm92, %v94, %v90
    %v96 = vmul.f32 1.0, %v95
    %v97 = vrcp.pop %v81
    %v98 = vmul.f32 %v81, %v97
    %v99 = vsub.f32 1.0, %v98
    %v100 = vmul.f32 %v97, %v99
    %v101 = vadd.f32 %v97, %v100
    %vm102 = vweird.f32 %v81
    %vm103 = vweird.f32 %v97
    %vm104 = vmor %vm102, %vm103
    %v105 = vsel %vm104, %v97, %v101
    %v106 = vand.u32 2147483647, %v81
    %vm107 = vcmp.eq.f32.partialorder %v106, 8.507059e+37
    %v108 = vand.u32 %v81, 2147483648
    %v109 = vor.u32 1.1754944e-38, %v108
    %v110 = vsel %vm107, %v109, %v105
    %v111 = vmul.f32 1.0, %v110
    %v112 = vld [vmem:[%s1] sm:$0x1]
    %v114 = vperm.slane %v112, 0
    %v116 = vmul.f32 %v114, %v96
    %v117 = vmul.f32 %v114, %v111
    %v118 = vmul.f32 %v46, %v116
    %v119 = vmul.f32 %v47, %v117
    %v120 = vld [vmem:[%s2] sm:$0x1]
    %v122 = vperm.slane %v120, 0
    %v124 = vadd.f32 %v118, %v122
    %v125 = vadd.f32 %v119, %v122
    %126 = vst [vmem:[#allocation5] sm:$0xff] %v124
    %127 = vst [vmem:[#allocation5 + $0x8] sm:$0xff] %v125
    // Predicated region
    $region18: #{encoder_layernorm.1} parent=1 // pred_check
      _
    $region19: #{encoder_layernorm.1} parent=1 // pred_check_branch
      %129 = sbr.rel (0) target = $region21
    $region20: #{encoder_layernorm.1} parent=1 // pred_region
      %131 = vsyncadd [#allocation4], 0
      %s132 = sshll.u32 [#allocation5], 4
      %s133 = int_to_ptr.vmem [resolvable:$true] %s132
      %s134 = sshll.u32 %s3, 4
      %s135 = int_to_ptr.hbm [resolvable:$true] %s134
      %140 = dma.vmem_to_hbm [thread:$0]  %s133, 256, %s135, [#allocation4], 128, 128, 8
    $region21: #{encoder_layernorm.1} parent=1 // pred_fallthru
      _
    // Predicated region
    $region22: #{encoder_layernorm.1} parent=1 // pred_check
      _
    $region23: #{encoder_layernorm.1} parent=1 // pred_check_branch
      %142 = sbr.rel (0) target = $region25
    $region24: #{encoder_layernorm.1} parent=1 // pred_region
      %144 = dma.done [#allocation4], 256
    $region25: #{encoder_layernorm.1} parent=1 // pred_fallthru
      _
    %145 = vsyncpa [#allocation3], 1
    %146 = vsyncpa [#allocation4], 1

</llo_original>
